<compile_context>
chip_gen: v5e
topology: v5e:2x2
jax: 0.10.0
libtpu: 0.0.40
codegen_flags: <defaults>
</compile_context>

<pallas_src>
import functools

import jax
import jax.numpy as jnp
from jax.experimental import pallas as pl
from jax.experimental.pallas import tpu as pltpu


def _bn_flow_kernel(x_ref, lg_ref, beta_ref, y_ref, mean_ref, var_ref, *, eps, n):
    """One lane-dense D-tile: reduce over the batch (sublane) axis and normalize."""
    x = x_ref[...].astype(jnp.float32)                          # (N, TILE_D)

    mean = jnp.mean(x, axis=0, keepdims=True)                   # (1, TILE_D)
    diff = x - mean
    # Unbiased variance (divide by N-1), matching torch.var default.
    # TODO(synk): N == 1 yields inf/nan variance, same as the PyTorch reference.
    var = jnp.sum(diff * diff, axis=0, keepdims=True) * (1.0 / (n - 1))

    inv_std = jax.lax.rsqrt(var + eps)                          # EUP rsqrt, (1, TILE_D)
    x_hat = diff * inv_std                                      # (N, TILE_D)

    log_gamma = lg_ref[...].astype(jnp.float32)                 # (1, TILE_D)
    beta = beta_ref[...].astype(jnp.float32)                    # (1, TILE_D)

    y = jnp.exp(log_gamma) * x_hat + beta                       # (N, TILE_D)
    y_ref[...] = y.astype(y_ref.dtype)

    mean_ref[...] = mean
    var_ref[...] = var


def _pick_tile_d(n, d, itemsize, vmem_budget_bytes):
    """Largest lane-dense feature tile whose double-buffered x+y tiles fit the budget."""
    if d % 128 != 0:
        # Small / irregular feature count: a single block equal to the full dims
        # satisfies the (8,128) BlockSpec constraint.
        return d
    itemsize = max(int(itemsize), 4)          # kernel computes in f32
    per_lane_bytes = 2 * 2 * n * itemsize     # 2 buffers * (x tile + y tile) per lane
    tile_d = max(128, (vmem_budget_bytes // per_lane_bytes) // 128 * 128)
    return min(tile_d, d)


def linear_batch_norm_forward(x, log_gamma, beta, running_mean, running_var,
                              momentum=0.9, eps=1e-5,
                              vmem_budget_bytes=16 * 1024 * 1024):
    """Training-mode forward of LinearBatchNorm.

    Returns (y, log_det, new_running_mean, new_running_var).
    """
    n, d = x.shape
    lg2d = log_gamma.reshape(1, d).astype(jnp.float32)
    beta2d = beta.reshape(1, d).astype(jnp.float32)

    tile_d = _pick_tile_d(n, d, x.dtype.itemsize, vmem_budget_bytes)
    grid = (pl.cdiv(d, tile_d),)

    kernel = functools.partial(_bn_flow_kernel, eps=float(eps), n=n)

    # Mem-bound picture for XLA's scheduler: read x once, write y once (+ tiny params/stats).
    bytes_accessed = 2 * n * d * x.dtype.itemsize + 4 * d * 4
    cost = pl.CostEstimate(flops=8 * n * d, transcendentals=2 * d,
                           bytes_accessed=bytes_accessed)

    y, bmean, bvar = pl.pallas_call(
        kernel,
        out_shape=(
            jax.ShapeDtypeStruct((n, d), x.dtype),          # y
            jax.ShapeDtypeStruct((1, d), jnp.float32),      # batch mean
            jax.ShapeDtypeStruct((1, d), jnp.float32),      # batch var (unbiased)
        ),
        grid=grid,
        in_specs=[
            pl.BlockSpec((n, tile_d), lambda j: (0, j)),
            pl.BlockSpec((1, tile_d), lambda j: (0, j)),
            pl.BlockSpec((1, tile_d), lambda j: (0, j)),
        ],
        out_specs=(
            pl.BlockSpec((n, tile_d), lambda j: (0, j)),
            pl.BlockSpec((1, tile_d), lambda j: (0, j)),
            pl.BlockSpec((1, tile_d), lambda j: (0, j)),
        ),
        compiler_params=pltpu.CompilerParams(
            # Feature tiles are independent -> shard across both v7x TensorCores.
            dimension_semantics=("parallel",),
            # Raise v5e's 16 MiB scoped default; stays within v7x's 64 MiB physical VMEM.
            vmem_limit_bytes=32 * 1024 * 1024,
        ),
        cost_estimate=cost,
    )(x, lg2d, beta2d)

    bmean1 = bmean[0]
    bvar1 = bvar[0]

    # log_det is the same scalar for every sample; compute it here from the kernel's
    # batch-var output instead of emitting a lane-width-1 (N,1) store stream.
    ld_scalar = jnp.sum(lg2d[0]) - 0.5 * jnp.sum(jnp.log(bvar1 + eps))
    log_det = jnp.full((n,), ld_scalar, dtype=jnp.float32)

    # Buffer EMA update (functional mirror of .mul_(m).add_(v*(1-m))).
    new_running_mean = running_mean * momentum + bmean1 * (1.0 - momentum)
    new_running_var = running_var * momentum + bvar1 * (1.0 - momentum)
    return y, log_det, new_running_mean, new_running_var


def _reference(x, log_gamma, beta, eps=1e-5):
    n = x.shape[0]
    mean = jnp.mean(x, axis=0)
    var = jnp.sum((x - mean) ** 2, axis=0) / (n - 1)
    x_hat = (x - mean) / jnp.sqrt(var + eps)
    y = jnp.exp(log_gamma) * x_hat + beta
    log_det = jnp.broadcast_to(log_gamma - 0.5 * jnp.log(var + eps), x.shape).sum(1)
    return y, log_det, mean, var


if __name__ == "__main__":
    key = jax.random.PRNGKey(0)
    k1, k2, k3 = jax.random.split(key, 3)

    # --- Shape matching the module (input_size=32, batch=8): single full-D block. ---
    N, D = 8, 32
    x = jax.random.normal(k1, (N, D), dtype=jnp.float32)
    log_gamma = 0.1 * jax.random.normal(k2, (D,), dtype=jnp.float32)
    beta = 0.1 * jax.random.normal(k3, (D,), dtype=jnp.float32)
    running_mean = jnp.zeros((D,), jnp.float32)
    running_var = jnp.ones((D,), jnp.float32)

    y, log_det, rmean, rvar = linear_batch_norm_forward(
        x, log_gamma, beta, running_mean, running_var, momentum=0.9, eps=1e-5)
    jax.block_until_ready((y, log_det, rmean, rvar))

    y_ref, ld_ref, m_ref, v_ref = _reference(x, log_gamma, beta, eps=1e-5)
    assert jnp.allclose(y, y_ref, atol=1e-5, rtol=1e-5)
    assert jnp.allclose(log_det, ld_ref, atol=1e-5, rtol=1e-5)
    assert jnp.allclose(rmean, 0.9 * running_mean + 0.1 * m_ref, atol=1e-6, rtol=1e-5)
    assert jnp.allclose(rvar, 0.9 * running_var + 0.1 * v_ref, atol=1e-6, rtol=1e-5)

    # --- Lane-dense multi-tile path (D % 128 == 0, tiny budget forces TILE_D=128, grid=2). ---
    N2, D2 = 16, 256
    k4, k5, k6 = jax.random.split(jax.random.PRNGKey(1), 3)
    x2 = jax.random.normal(k4, (N2, D2), dtype=jnp.float32)
    lg2 = 0.1 * jax.random.normal(k5, (D2,), dtype=jnp.float32)
    b2 = 0.1 * jax.random.normal(k6, (D2,), dtype=jnp.float32)
    y2, ld2, _, _ = linear_batch_norm_forward(
        x2, lg2, b2, jnp.zeros((D2,), jnp.float32), jnp.ones((D2,), jnp.float32),
        momentum=0.9, eps=1e-5, vmem_budget_bytes=32 * 1024)
    jax.block_until_ready((y2, ld2))
    y2_ref, ld2_ref, _, _ = _reference(x2, lg2, b2, eps=1e-5)
    assert jnp.allclose(y2, y2_ref, atol=1e-5, rtol=1e-5)
    assert jnp.allclose(ld2, ld2_ref, atol=1e-4, rtol=1e-5)

    print("KERNEL_OK")
</pallas_src>

<mosaic_0001>
module attributes {stable_mosaic.version = 11 : i64} {
  func.func @_bn_flow_kernel(%arg0: i32, %arg1: memref<8x32xf32, #tpu.memory_space<vmem>>, %arg2: memref<1x32xf32, #tpu.memory_space<vmem>>, %arg3: memref<1x32xf32, #tpu.memory_space<vmem>>, %arg4: memref<8x32xf32, #tpu.memory_space<vmem>>, %arg5: memref<1x32xf32, #tpu.memory_space<vmem>>, %arg6: memref<1x32xf32, #tpu.memory_space<vmem>>) attributes {dimension_semantics = [#tpu.dimension_semantics<parallel>], iteration_bounds = array<i64: 1>, scalar_prefetch = 0 : i64, scratch_operands = 0 : i64, tpu.core_type = #tpu.core_type<tc>, window_params = [{transform_indices = @transform_0, window_bounds = array<i64: 8, 32>}, {transform_indices = @transform_1, window_bounds = array<i64: 1, 32>}, {transform_indices = @transform_2, window_bounds = array<i64: 1, 32>}, {transform_indices = @transform_3, window_bounds = array<i64: 8, 32>}, {transform_indices = @transform_4, window_bounds = array<i64: 1, 32>}, {transform_indices = @transform_5, window_bounds = array<i64: 1, 32>}]} {
    %c0 = arith.constant 0 : index
    %c0_0 = arith.constant 0 : index
    %0 = vector.load %arg1[%c0, %c0_0] : memref<8x32xf32, #tpu.memory_space<vmem>>, vector<8x32xf32>
    %cst = arith.constant dense<0.000000e+00> : vector<32xf32>
    %1 = vector.multi_reduction <add>, %0, %cst [0] : vector<8x32xf32> to vector<32xf32>
    %2 = vector.shape_cast %1 : vector<32xf32> to vector<1x32xf32>
    %cst_1 = arith.constant 8.000000e+00 : f32
    %3 = vector.broadcast %cst_1 : f32 to vector<1x32xf32>
    %4 = arith.divf %2, %3 : vector<1x32xf32>
    %5 = vector.broadcast %4 : vector<1x32xf32> to vector<8x32xf32>
    %6 = arith.subf %0, %5 : vector<8x32xf32>
    %7 = arith.mulf %6, %6 : vector<8x32xf32>
    %cst_2 = arith.constant dense<0.000000e+00> : vector<32xf32>
    %8 = vector.multi_reduction <add>, %7, %cst_2 [0] : vector<8x32xf32> to vector<32xf32>
    %9 = vector.shape_cast %8 : vector<32xf32> to vector<1x32xf32>
    %cst_3 = arith.constant 0.142857149 : f32
    %10 = vector.broadcast %cst_3 : f32 to vector<1x32xf32>
    %11 = arith.mulf %9, %10 : vector<1x32xf32>
    %cst_4 = arith.constant 9.99999974E-6 : f32
    %12 = vector.broadcast %cst_4 : f32 to vector<1x32xf32>
    %13 = arith.addf %11, %12 : vector<1x32xf32>
    %14 = math.rsqrt %13 : vector<1x32xf32>
    %15 = vector.broadcast %14 : vector<1x32xf32> to vector<8x32xf32>
    %16 = arith.mulf %6, %15 : vector<8x32xf32>
    %c0_5 = arith.constant 0 : index
    %c0_6 = arith.constant 0 : index
    %17 = vector.load %arg2[%c0_5, %c0_6] : memref<1x32xf32, #tpu.memory_space<vmem>>, vector<1x32xf32>
    %c0_7 = arith.constant 0 : index
    %c0_8 = arith.constant 0 : index
    %18 = vector.load %arg3[%c0_7, %c0_8] : memref<1x32xf32, #tpu.memory_space<vmem>>, vector<1x32xf32>
    %19 = math.exp %17 : vector<1x32xf32>
    %20 = vector.broadcast %19 : vector<1x32xf32> to vector<8x32xf32>
    %21 = arith.mulf %20, %16 : vector<8x32xf32>
    %22 = vector.broadcast %18 : vector<1x32xf32> to vector<8x32xf32>
    %23 = arith.addf %21, %22 : vector<8x32xf32>
    %c0_9 = arith.constant 0 : index
    %c0_10 = arith.constant 0 : index
    %24 = vector.load %arg4[%c0_9, %c0_10] : memref<8x32xf32, #tpu.memory_space<vmem>>, vector<8x32xf32>
    tpu.vector_store %arg4[%c0_9, %c0_10], %23 {strides = array<i32>} : memref<8x32xf32, #tpu.memory_space<vmem>>, vector<8x32xf32>,
    %c0_11 = arith.constant 0 : index
    %c0_12 = arith.constant 0 : index
    %25 = vector.load %arg5[%c0_11, %c0_12] : memref<1x32xf32, #tpu.memory_space<vmem>>, vector<1x32xf32>
    tpu.vector_store %arg5[%c0_11, %c0_12], %4 {strides = array<i32>} : memref<1x32xf32, #tpu.memory_space<vmem>>, vector<1x32xf32>,
    %c0_13 = arith.constant 0 : index
    %c0_14 = arith.constant 0 : index
    %26 = vector.load %arg6[%c0_13, %c0_14] : memref<1x32xf32, #tpu.memory_space<vmem>>, vector<1x32xf32>
    tpu.vector_store %arg6[%c0_13, %c0_14], %11 {strides = array<i32>} : memref<1x32xf32, #tpu.memory_space<vmem>>, vector<1x32xf32>,
    return
  }
  func.func @transform_0(%arg0: i32) -> (i32, i32) {
    %c0_i32 = arith.constant 0 : i32
    %c0_i32_0 = arith.constant 0 : i32
    return %c0_i32, %arg0 : i32, i32
  }
  func.func @transform_1(%arg0: i32) -> (i32, i32) {
    %c0_i32 = arith.constant 0 : i32
    %c0_i32_0 = arith.constant 0 : i32
    return %c0_i32, %arg0 : i32, i32
  }
  func.func @transform_2(%arg0: i32) -> (i32, i32) {
    %c0_i32 = arith.constant 0 : i32
    %c0_i32_0 = arith.constant 0 : i32
    return %c0_i32, %arg0 : i32, i32
  }
  func.func @transform_3(%arg0: i32) -> (i32, i32) {
    %c0_i32 = arith.constant 0 : i32
    %c0_i32_0 = arith.constant 0 : i32
    return %c0_i32, %arg0 : i32, i32
  }
  func.func @transform_4(%arg0: i32) -> (i32, i32) {
    %c0_i32 = arith.constant 0 : i32
    %c0_i32_0 = arith.constant 0 : i32
    return %c0_i32, %arg0 : i32, i32
  }
  func.func @transform_5(%arg0: i32) -> (i32, i32) {
    %c0_i32 = arith.constant 0 : i32
    %c0_i32_0 = arith.constant 0 : i32
    return %c0_i32, %arg0 : i32, i32
  }
}

</mosaic_0001>

<llo_original>
// kernel: tpu_custom_call.1
$region0: #{tpu_custom_call.1}
  #allocation0 [shape = 'u32[]', space=smem, size = 0x4, offset = 0x4, fixed_abs, tag = 'smem constant byte address 0x4 - core index']
  #allocation1 [shape = 'u32[72,128]{1,0:T(1,128)}', space=vmem, size = 0x9000, scoped, tag = 'internal scratch']
  %s0 = inlined_call_operand.hbm [shape: f32[8,32], index: 0, kind: input, shape index: {}]
  %s1 = inlined_call_operand.hbm [shape: f32[1,32], index: 1, kind: input, shape index: {}]
  %s2 = inlined_call_operand.vmem [shape: f32[1,32], index: 2, kind: input, shape index: {}]
  %s3 = inlined_call_operand.hbm [shape: f32[8,32], index: 3, kind: output, shape index: {0}]
  %s4 = inlined_call_operand.hbm [shape: f32[1,32], index: 4, kind: output, shape index: {1}]
  %s5 = inlined_call_operand.hbm [shape: f32[1,32], index: 5, kind: output, shape index: {2}]
  %6 = xla_tuple %s3, %s4, %s5
  %s7 = sld [smem:[#allocation0]]
  $region46: #{tpu_custom_call.1} parent=0
    _
  %s9 = ssub.s32 1, %s7
  %s10 = scalar_select 0, %s9, %s7
  $region1: #{tpu_custom_call.1} parent=0
    #allocation2 [shape = 'u8[4096]{0}', space=vmem, size = 0x1000, scoped, tag = 'input window, operand 0, single buffered']
    #allocation3 [shape = 's32[1]{0}', space=sflag, size = 0x4, scoped, tag = 'scoped memory for tpu_custom_call.1']
    #allocation4 [shape = 's32[1]{0}', space=sflag, size = 0x4, scoped, tag = 'scoped memory for tpu_custom_call.1']
    #allocation5 [shape = 'u8[512]{0}', space=vmem, size = 0x400, scoped, tag = 'input window, operand 1, single buffered']
    #allocation6 [shape = 's32[1]{0}', space=sflag, size = 0x4, scoped, tag = 'scoped memory for tpu_custom_call.1']
    #allocation7 [shape = 'u8[4096]{0}', space=vmem, size = 0x1000, scoped, tag = 'output window, operand 0, single buffered']
    #allocation8 [shape = 'u8[512]{0}', space=vmem, size = 0x400, scoped, tag = 'output window, operand 1, single buffered']
    #allocation9 [shape = 's32[1]{0}', space=sflag, size = 0x4, scoped, tag = 'scoped memory for tpu_custom_call.1']
    #allocation10 [shape = 'u8[512]{0}', space=vmem, size = 0x400, scoped, tag = 'output window, operand 2, single buffered']
    %11 = vsyncpa [#allocation3], 0
    %12 = vsyncpa [#allocation6], 0
    %13 = vsyncpa [#allocation4], 0
    %14 = vsyncpa [#allocation9], 0
    // Predicated region
    $region2: #{tpu_custom_call.1} parent=1 // pred_check
      _
    $region3: #{tpu_custom_call.1} parent=1 // pred_check_branch
      %16 = sbr.rel (0) target = $region5
    $region4: #{tpu_custom_call.1} parent=1 // pred_region
      %18 = vsyncadd [#allocation3], 0
      %s20 = sshll.u32 %s0, 4
      %s21 = int_to_ptr.hbm [resolvable:$true] %s20
      %s22 = sshll.u32 [#allocation2], 4
      %s23 = int_to_ptr.vmem [resolvable:$true] %s22
      %25 = dma.hbm_to_vmem [thread:$0]  %s21, 128, %s23, [#allocation3]
    $region5: #{tpu_custom_call.1} parent=1 // pred_fallthru
      _
    // Predicated region
    $region6: #{tpu_custom_call.1} parent=1 // pred_check
      _
    $region7: #{tpu_custom_call.1} parent=1 // pred_check_branch
      %27 = sbr.rel (0) target = $region9
    $region8: #{tpu_custom_call.1} parent=1 // pred_region
      %29 = vsyncadd [#allocation6], 0
      %s31 = sshll.u32 %s1, 4
      %s32 = int_to_ptr.hbm [resolvable:$true] %s31
      %s33 = sshll.u32 [#allocation5], 4
      %s34 = int_to_ptr.vmem [resolvable:$true] %s33
      %36 = dma.hbm_to_vmem [thread:$0]  %s32, 16, %s34, [#allocation6]
    $region9: #{tpu_custom_call.1} parent=1 // pred_fallthru
      _
    // Predicated region
    $region10: #{tpu_custom_call.1} parent=1 // pred_check
      _
    $region11: #{tpu_custom_call.1} parent=1 // pred_check_branch
      %38 = sbr.rel (0) target = $region13
    $region12: #{tpu_custom_call.1} parent=1 // pred_region
      _
    $region13: #{tpu_custom_call.1} parent=1 // pred_fallthru
      _
    // Predicated region
    $region14: #{tpu_custom_call.1} parent=1 // pred_check
      _
    $region15: #{tpu_custom_call.1} parent=1 // pred_check_branch
      %40 = sbr.rel (0) target = $region17
    $region16: #{tpu_custom_call.1} parent=1 // pred_region
      %42 = dma.done [#allocation3], 128
    $region17: #{tpu_custom_call.1} parent=1 // pred_fallthru
      _
    // Predicated region
    $region18: #{tpu_custom_call.1} parent=1 // pred_check
      _
    $region19: #{tpu_custom_call.1} parent=1 // pred_check_branch
      %44 = sbr.rel (0) target = $region21
    $region20: #{tpu_custom_call.1} parent=1 // pred_region
      %46 = dma.done [#allocation6], 16
    $region21: #{tpu_custom_call.1} parent=1 // pred_fallthru
      _
    %v47 = vld [vmem:[#allocation2] sm:$0xff]
    %vm48 = vcmask 261120
    %v49 = vsel %vm48, %v47, 0.0
    %v50 = vrot.slane %v49, 4
    %v51 = vadd.f32 %v49, %v50
    %v52 = vrot.slane %v51, 2
    %v53 = vadd.f32 %v51, %v52
    %v54 = vrot.slane %v53, 1
    %v55 = vadd.f32 %v53, %v54
    %v56 = vrcp.pop 8.0
    %v57 = vmul.f32 8.0, %v56
    %v58 = vsub.f32 1.0, %v57
    %v59 = vmul.f32 %v56, %v58
    %v60 = vadd.f32 %v56, %v59
    %vm61 = vweird.f32 %v56
    %v62 = vsel %vm61, %v56, %v60
    %v63 = vmul.f32 %v55, %v62
    %v64 = vsub.f32 %v47, %v63
    %v65 = vmul.f32 %v64, %v64
    %v66 = vsel %vm48, %v65, 0.0
    %v67 = vrot.slane %v66, 4
    %v68 = vadd.f32 %v66, %v67
    %v69 = vrot.slane %v68, 2
    %v70 = vadd.f32 %v68, %v69
    %v71 = vrot.slane %v70, 1
    %v72 = vadd.f32 %v70, %v71
    %v73 = vmul.f32 %v72, 0.14285715
    %v74 = vadd.f32 %v73, 1e-05
    %v75 = vrsqrt.pop %v74
    %v76 = vmul.f32 %v75, %v74
    %v77 = vmul.f32 %v76, %v75
    %v78 = vmul.f32 0.5, %v77
    %v79 = vsub.f32 1.5, %v78
    %v80 = vmul.f32 %v75, %v79
    %vm81 = vweird.f32 %v74
    %vm82 = vweird.f32 %v75
    %vm83 = vmor %vm81, %vm82
    %v84 = vsel %vm83, %v75, %v80
    %v85 = vmul.f32 %v64, %v84
    %v86 = vld [vmem:[#allocation5] sm:$0x1]
    %v87 = vld [vmem:[%s2] sm:$0x1]
    %v88 = vmul.f32 %v86, 1.442695
    %v89 = vpow.pop %v88
    %v91 = vperm.slane %v89, 0
    %v93 = vmul.f32 %v91, %v85
    %v95 = vperm.slane %v87, 0
    %v97 = vadd.f32 %v93, %v95
    %98 = vst.msk [vmem:[#allocation7] sm:$0xff] %vm48, %v97
    %vm99 = vcmask 253952
    %100 = vst.msk [vmem:[#allocation8] sm:$0x1] %vm99, %v63
    %101 = vst.msk [vmem:[#allocation10] sm:$0x1] %vm99, %v73
    // Predicated region
    $region22: #{tpu_custom_call.1} parent=1 // pred_check
      _
    $region23: #{tpu_custom_call.1} parent=1 // pred_check_branch
      %103 = sbr.rel (0) target = $region25
    $region24: #{tpu_custom_call.1} parent=1 // pred_region
      %105 = vsyncadd [#allocation4], 0
      %s107 = sshll.u32 [#allocation7], 4
      %s108 = int_to_ptr.vmem [resolvable:$true] %s107
      %s109 = sshll.u32 %s3, 4
      %s110 = int_to_ptr.hbm [resolvable:$true] %s109
      %112 = dma.vmem_to_hbm [thread:$0]  %s108, 128, %s110, [#allocation4]
    $region25: #{tpu_custom_call.1} parent=1 // pred_fallthru
      _
    // Predicated region
    $region26: #{tpu_custom_call.1} parent=1 // pred_check
      _
    $region27: #{tpu_custom_call.1} parent=1 // pred_check_branch
      %114 = sbr.rel (0) target = $region29
    $region28: #{tpu_custom_call.1} parent=1 // pred_region
      %116 = vsyncadd [#allocation9], 0
      %s118 = sshll.u32 [#allocation8], 4
      %s119 = int_to_ptr.vmem [resolvable:$true] %s118
      %s120 = sshll.u32 %s4, 4
      %s121 = int_to_ptr.hbm [resolvable:$true] %s120
      %123 = dma.vmem_to_hbm [thread:$0]  %s119, 16, %s121, [#allocation9]
    $region29: #{tpu_custom_call.1} parent=1 // pred_fallthru
      _
    // Predicated region
    $region30: #{tpu_custom_call.1} parent=1 // pred_check
      _
    $region31: #{tpu_custom_call.1} parent=1 // pred_check_branch
      %125 = sbr.rel (0) target = $region33
    $region32: #{tpu_custom_call.1} parent=1 // pred_region
      %127 = vsyncadd [#allocation9], 0
      %s129 = sshll.u32 [#allocation10], 4
      %s130 = int_to_ptr.vmem [resolvable:$true] %s129
      %s131 = sshll.u32 %s5, 4
      %s132 = int_to_ptr.hbm [resolvable:$true] %s131
      %134 = dma.vmem_to_hbm [thread:$0]  %s130, 16, %s132, [#allocation9]
    $region33: #{tpu_custom_call.1} parent=1 // pred_fallthru
      _
    // Predicated region
    $region34: #{tpu_custom_call.1} parent=1 // pred_check
      _
    $region35: #{tpu_custom_call.1} parent=1 // pred_check_branch
      %136 = sbr.rel (0) target = $region37
    $region36: #{tpu_custom_call.1} parent=1 // pred_region
      %138 = dma.done [#allocation4], 128
    $region37: #{tpu_custom_call.1} parent=1 // pred_fallthru
      _
    // Predicated region
    $region38: #{tpu_custom_call.1} parent=1 // pred_check
      _
    $region39: #{tpu_custom_call.1} parent=1 // pred_check_branch
      %140 = sbr.rel (0) target = $region41
    $region40: #{tpu_custom_call.1} parent=1 // pred_region
      %142 = dma.done [#allocation9], 16
    $region41: #{tpu_custom_call.1} parent=1 // pred_fallthru
      _
    // Predicated region
    $region42: #{tpu_custom_call.1} parent=1 // pred_check
      _
    $region43: #{tpu_custom_call.1} parent=1 // pred_check_branch
      %144 = sbr.rel (0) target = $region45
    $region44: #{tpu_custom_call.1} parent=1 // pred_region
      %146 = dma.done [#allocation9], 16
    $region45: #{tpu_custom_call.1} parent=1 // pred_fallthru
      _
    %147 = vsyncpa [#allocation3], 1
    %148 = vsyncpa [#allocation6], 1
    %149 = vsyncpa [#allocation4], 1
    %150 = vsyncpa [#allocation9], 1

</llo_original>
